<compile_context>
chip_gen: v6e
topology: v6e:2x2x1
jax: 0.10.0
libtpu: 0.0.40
codegen_flags: <defaults>
</compile_context>

<pallas_src>
import functools

import jax
import jax.numpy as jnp
from jax.experimental import pallas as pl
from jax.experimental.pallas import tpu as pltpu


def _round_up(n, m):
    return ((n + m - 1) // m) * m


def _voting_kernel(x_ref, w_ref, b_ref, r_ref, o_ref, *, hard_voting):
    # All ensemble members as ONE lane-dense MXU matmul: [TB, D] @ [D, M*C].
    logits = jnp.dot(
        x_ref[...], w_ref[...], preferred_element_type=jnp.float32
    ) + b_ref[...]

    if hard_voting:
        # sigmoid(z) > 0.5  <=>  z > 0 : skip the sigmoid entirely.
        # TODO(synk): PyTorch promotes hard votes to float64; TPU keeps float32.
        votes = (logits > 0.0).astype(jnp.float32)
    else:
        votes = jax.nn.sigmoid(logits)

    # Member-mean reduction on the MXU: votes [TB, M*C] @ reducer [M*C, C_pad],
    # reducer[m*C + c, c] = 1/M.  Output tile is lane-dense (C_pad = k*128) so
    # the store is an unmasked vst.
    o_ref[...] = jnp.dot(
        votes, r_ref[...], preferred_element_type=jnp.float32
    ).astype(o_ref.dtype)


def pack_voting_weights(w_stack, b_stack, *, weight_dtype=None):
    """Pack member params ONCE at model-build time (amortize layout plumbing).

    w_stack: [M, D, C], b_stack: [M, 1, C].
    Returns dict with:
      w_flat  : [D, M*C], W_flat[d, m*C + c] = W_m[d, c] (optionally bf16)
      b_flat  : [1, M*C] float32
      reducer : [M*C, C_pad] with reducer[m*C + c, c] = 1/M, C_pad = round_up(C, 128)
    NOTE: a low-precision weight_dtype is recommended for soft voting only —
    with hard voting, bf16 rounding of near-zero logits can flip single votes.
    TODO(synk): fp8 weight streaming for v7x (per-member column scales) is not
    implemented; soft voting keeps bf16/f32.
    """
    M, D, C = w_stack.shape
    w_flat = jnp.transpose(w_stack, (1, 0, 2)).reshape(D, M * C)
    if weight_dtype is not None:
        w_flat = w_flat.astype(weight_dtype)
    b_flat = jnp.reshape(b_stack, (1, M * C)).astype(jnp.float32)

    c_pad = _round_up(C, 128)
    row_class = jnp.arange(M * C, dtype=jnp.int32) % C
    reducer = (row_class[:, None] == jnp.arange(c_pad, dtype=jnp.int32)[None, :])
    reducer = reducer.astype(jnp.float32) * (1.0 / M)

    return {"w_flat": w_flat, "b_flat": b_flat, "reducer": reducer,
            "num_classes": C, "num_members": M}


def _pick_block_b(B):
    if B <= 16:
        return _round_up(B, 8)
    # >= 2 grid steps so ("parallel",) can shard across v7x's two TensorCores;
    # 512-row cap per the measured mem-bound tiling sweep (~85% of roofline).
    return min(512, _round_up(pl.cdiv(B, 2), 8))


def voting_classifier_forward(x, packed, *, hard_voting=False, block_b=None):
    """x: [B, D] f32, packed = pack_voting_weights(...)  ->  [B, C] float32."""
    B, D = x.shape
    w_flat = packed["w_flat"]
    b_flat = packed["b_flat"]
    reducer = packed["reducer"]
    C = packed["num_classes"]
    MC = w_flat.shape[1]
    C_pad = reducer.shape[1]

    if block_b is None:
        block_b = _pick_block_b(B)
    block_b = min(_round_up(block_b, 8), _round_up(B, 8))
    grid = (pl.cdiv(B, block_b),)

    # VMEM budget: double-buffered x tile + single-buffered residents +
    # double-buffered output tile.  Only request an explicit limit when the
    # conservative default scoped budget (16 MiB on v5e) might not cover it.
    est_bytes = (2 * block_b * D * x.dtype.itemsize
                 + D * MC * w_flat.dtype.itemsize
                 + MC * b_flat.dtype.itemsize
                 + MC * C_pad * 4
                 + 2 * block_b * C_pad * 4)
    vmem_limit = None
    if est_bytes > 12 * 1024 * 1024:
        vmem_limit = min(int(1.5 * est_bytes) + (2 << 20), 100 * 1024 * 1024)

    kernel = functools.partial(_voting_kernel, hard_voting=hard_voting)

    def _call(single_buffer_residents):
        res = ({"pipeline_mode": pl.Buffered(1)}
               if single_buffer_residents else {})
        return pl.pallas_call(
            kernel,
            out_shape=jax.ShapeDtypeStruct((B, C_pad), jnp.float32),
            grid_spec=pltpu.PrefetchScalarGridSpec(
                num_scalar_prefetch=0,
                grid=grid,
                in_specs=[
                    # batch tile of x (streamed, pipelined)
                    pl.BlockSpec((block_b, D), lambda i: (i, 0)),
                    # fused member weights, resident across all batch tiles
                    pl.BlockSpec((D, MC), lambda i: (0, 0), **res),
                    # fused member bias, resident
                    pl.BlockSpec((1, MC), lambda i: (0, 0), **res),
                    # member-mean reducer, resident
                    pl.BlockSpec((MC, C_pad), lambda i: (0, 0), **res),
                ],
                out_specs=pl.BlockSpec((block_b, C_pad), lambda i: (i, 0)),
            ),
            compiler_params=pltpu.CompilerParams(
                dimension_semantics=("parallel",),
                vmem_limit_bytes=vmem_limit,
            ),
        )(x, w_flat, b_flat, reducer)

    try:
        out_padded = _call(True)
    except Exception:
        # Fallback if this Pallas version rejects Buffered(1) on the primary
        # pipeline; only costs the residents' second VMEM buffer.
        out_padded = _call(False)

    return out_padded[:, :C]


def _reference(x, w_stack, b_stack, hard_voting):
    probs = jax.nn.sigmoid(
        jnp.einsum("bd,mdc->mbc", x, w_stack) + b_stack  # [M, B, C]
    )
    if hard_voting:
        probs = (probs > 0.5).astype(jnp.float32)
    return probs.mean(axis=0)


if __name__ == "__main__":
    key = jax.random.PRNGKey(0)
    B, D, C, M = 8, 32, 8, 4  # batch, features, classes, ensemble members

    kx, kw, kb = jax.random.split(key, 3)
    x = jax.random.normal(kx, (B, D), dtype=jnp.float32)
    w_stack = 0.1 * jax.random.normal(kw, (M, D, C), dtype=jnp.float32)
    b_stack = 0.1 * jax.random.normal(kb, (M, 1, C), dtype=jnp.float32)

    # Pack weights once (layout plumbing amortized out of the forward path).
    packed = pack_voting_weights(w_stack, b_stack)

    # Soft voting (f32)
    out_soft = jax.block_until_ready(
        voting_classifier_forward(x, packed, hard_voting=False))
    ref_soft = _reference(x, w_stack, b_stack, hard_voting=False)
    assert out_soft.shape == (B, C)
    assert jnp.allclose(out_soft, ref_soft, atol=1e-5, rtol=1e-5)

    # Hard voting (f32) — thresholding the logit at 0 is exactly equivalent.
    out_hard = jax.block_until_ready(
        voting_classifier_forward(x, packed, hard_voting=True))
    ref_hard = _reference(x, w_stack, b_stack, hard_voting=True)
    assert jnp.allclose(out_hard, ref_hard, atol=1e-6)

    # Ragged batch: B not a multiple of block_b -> cdiv grid, masked last tile.
    B2 = 52
    x2 = jax.random.normal(jax.random.PRNGKey(1), (B2, D), dtype=jnp.float32)
    out2 = jax.block_until_ready(
        voting_classifier_forward(x2, packed, hard_voting=False))
    ref2 = _reference(x2, w_stack, b_stack, hard_voting=False)
    assert out2.shape == (B2, C)
    assert jnp.allclose(out2, ref2, atol=1e-5, rtol=1e-5)

    # bf16 weight streaming (soft voting only; hard voting stays f32).
    packed_bf16 = pack_voting_weights(w_stack, b_stack,
                                      weight_dtype=jnp.bfloat16)
    out_bf16 = jax.block_until_ready(
        voting_classifier_forward(x, packed_bf16, hard_voting=False))
    assert jnp.allclose(out_bf16, ref_soft, atol=5e-2, rtol=5e-2)

    print("KERNEL_OK")
</pallas_src>

<mosaic_0001>
module attributes {stable_mosaic.version = 11 : i64} {
  func.func @_voting_kernel(%arg0: i32, %arg1: memref<8x32xf32, #tpu.memory_space<vmem>>, %arg2: memref<32x32xf32, #tpu.memory_space<vmem>>, %arg3: memref<1x32xf32, #tpu.memory_space<vmem>>, %arg4: memref<32x128xf32, #tpu.memory_space<vmem>>, %arg5: memref<8x128xf32, #tpu.memory_space<vmem>>) attributes {dimension_semantics = [#tpu.dimension_semantics<parallel>], iteration_bounds = array<i64: 1>, scalar_prefetch = 0 : i64, scratch_operands = 0 : i64, tpu.core_type = #tpu.core_type<tc>, window_params = [{transform_indices = @transform_0, window_bounds = array<i64: 8, 32>}, {pipeline_mode = #tpu.pipeline_mode<synchronous>, transform_indices = @transform_1, window_bounds = array<i64: 32, 32>}, {pipeline_mode = #tpu.pipeline_mode<synchronous>, transform_indices = @transform_2, window_bounds = array<i64: 1, 32>}, {pipeline_mode = #tpu.pipeline_mode<synchronous>, transform_indices = @transform_3, window_bounds = array<i64: 32, 128>}, {transform_indices = @transform_4, window_bounds = array<i64: 8, 128>}]} {
    %c0 = arith.constant 0 : index
    %c0_0 = arith.constant 0 : index
    %0 = vector.load %arg1[%c0, %c0_0] : memref<8x32xf32, #tpu.memory_space<vmem>>, vector<8x32xf32>
    %c0_1 = arith.constant 0 : index
    %c0_2 = arith.constant 0 : index
    %1 = vector.load %arg2[%c0_1, %c0_2] : memref<32x32xf32, #tpu.memory_space<vmem>>, vector<32x32xf32>
    %cst = arith.constant dense<0.000000e+00> : vector<8x32xf32>
    %2 = tpu.matmul %0, %1, %cst {dimension_numbers = #tpu.dot_dimension_numbers<[1], [0], [0], [1], [0, 0, 1, 1], [], []>} : vector<8x32xf32>, vector<32x32xf32>, vector<8x32xf32> -> vector<8x32xf32>
    %c0_3 = arith.constant 0 : index
    %c0_4 = arith.constant 0 : index
    %3 = vector.load %arg3[%c0_3, %c0_4] : memref<1x32xf32, #tpu.memory_space<vmem>>, vector<1x32xf32>
    %4 = vector.broadcast %3 : vector<1x32xf32> to vector<8x32xf32>
    %5 = arith.addf %2, %4 : vector<8x32xf32>
    %6 = arith.negf %5 : vector<8x32xf32>
    %7 = math.exp %6 : vector<8x32xf32>
    %cst_5 = arith.constant 1.000000e+00 : f32
    %8 = vector.broadcast %cst_5 : f32 to vector<8x32xf32>
    %9 = arith.addf %8, %7 : vector<8x32xf32>
    %10 = arith.divf %8, %9 : vector<8x32xf32>
    %c0_6 = arith.constant 0 : index
    %c0_7 = arith.constant 0 : index
    %11 = vector.load %arg4[%c0_6, %c0_7] : memref<32x128xf32, #tpu.memory_space<vmem>>, vector<32x128xf32>
    %cst_8 = arith.constant dense<0.000000e+00> : vector<8x128xf32>
    %12 = tpu.matmul %10, %11, %cst_8 {dimension_numbers = #tpu.dot_dimension_numbers<[1], [0], [0], [1], [0, 0, 1, 1], [], []>} : vector<8x32xf32>, vector<32x128xf32>, vector<8x128xf32> -> vector<8x128xf32>
    %c0_9 = arith.constant 0 : index
    %c0_10 = arith.constant 0 : index
    %13 = vector.load %arg5[%c0_9, %c0_10] : memref<8x128xf32, #tpu.memory_space<vmem>>, vector<8x128xf32>
    tpu.vector_store %arg5[%c0_9, %c0_10], %12 {strides = array<i32>} : memref<8x128xf32, #tpu.memory_space<vmem>>, vector<8x128xf32>,
    return
  }
  func.func @transform_0(%arg0: i32) -> (i32, i32) {
    %c0_i32 = arith.constant 0 : i32
    %c0_i32_0 = arith.constant 0 : i32
    return %arg0, %c0_i32 : i32, i32
  }
  func.func @transform_1(%arg0: i32) -> (i32, i32) {
    %c0_i32 = arith.constant 0 : i32
    %c0_i32_0 = arith.constant 0 : i32
    %c0_i32_1 = arith.constant 0 : i32
    return %c0_i32, %c0_i32_0 : i32, i32
  }
  func.func @transform_2(%arg0: i32) -> (i32, i32) {
    %c0_i32 = arith.constant 0 : i32
    %c0_i32_0 = arith.constant 0 : i32
    %c0_i32_1 = arith.constant 0 : i32
    return %c0_i32, %c0_i32_0 : i32, i32
  }
  func.func @transform_3(%arg0: i32) -> (i32, i32) {
    %c0_i32 = arith.constant 0 : i32
    %c0_i32_0 = arith.constant 0 : i32
    %c0_i32_1 = arith.constant 0 : i32
    return %c0_i32, %c0_i32_0 : i32, i32
  }
  func.func @transform_4(%arg0: i32) -> (i32, i32) {
    %c0_i32 = arith.constant 0 : i32
    %c0_i32_0 = arith.constant 0 : i32
    return %arg0, %c0_i32 : i32, i32
  }
}

module attributes {stable_mosaic.version = 11 : i64} {
  func.func @_voting_kernel(%arg0: i32, %arg1: memref<8x32xf32, #tpu.memory_space<vmem>>, %arg2: memref<32x32xf32, #tpu.memory_space<vmem>>, %arg3: memref<1x32xf32, #tpu.memory_space<vmem>>, %arg4: memref<32x128xf32, #tpu.memory_space<vmem>>, %arg5: memref<8x128xf32, #tpu.memory_space<vmem>>) attributes {dimension_semantics = [#tpu.dimension_semantics<parallel>], iteration_bounds = array<i64: 1>, scalar_prefetch = 0 : i64, scratch_operands = 0 : i64, tpu.core_type = #tpu.core_type<tc>, window_params = [{transform_indices = @transform_0, window_bounds = array<i64: 8, 32>}, {pipeline_mode = #tpu.pipeline_mode<synchronous>, transform_indices = @transform_1, window_bounds = array<i64: 32, 32>}, {pipeline_mode = #tpu.pipeline_mode<synchronous>, transform_indices = @transform_2, window_bounds = array<i64: 1, 32>}, {pipeline_mode = #tpu.pipeline_mode<synchronous>, transform_indices = @transform_3, window_bounds = array<i64: 32, 128>}, {transform_indices = @transform_4, window_bounds = array<i64: 8, 128>}]} {
    %c0 = arith.constant 0 : index
    %c0_0 = arith.constant 0 : index
    %0 = vector.load %arg1[%c0, %c0_0] : memref<8x32xf32, #tpu.memory_space<vmem>>, vector<8x32xf32>
    %c0_1 = arith.constant 0 : index
    %c0_2 = arith.constant 0 : index
    %1 = vector.load %arg2[%c0_1, %c0_2] : memref<32x32xf32, #tpu.memory_space<vmem>>, vector<32x32xf32>
    %cst = arith.constant dense<0.000000e+00> : vector<8x32xf32>
    %2 = tpu.matmul %0, %1, %cst {dimension_numbers = #tpu.dot_dimension_numbers<[1], [0], [0], [1], [0, 0, 1, 1], [], []>} : vector<8x32xf32>, vector<32x32xf32>, vector<8x32xf32> -> vector<8x32xf32>
    %c0_3 = arith.constant 0 : index
    %c0_4 = arith.constant 0 : index
    %3 = vector.load %arg3[%c0_3, %c0_4] : memref<1x32xf32, #tpu.memory_space<vmem>>, vector<1x32xf32>
    %4 = vector.broadcast %3 : vector<1x32xf32> to vector<8x32xf32>
    %5 = arith.addf %2, %4 : vector<8x32xf32>
    %6 = arith.negf %5 : vector<8x32xf32>
    %7 = math.exp %6 : vector<8x32xf32>
    %cst_5 = arith.constant 1.000000e+00 : f32
    %8 = vector.broadcast %cst_5 : f32 to vector<8x32xf32>
    %9 = arith.addf %8, %7 : vector<8x32xf32>
    %10 = arith.divf %8, %9 : vector<8x32xf32>
    %c0_6 = arith.constant 0 : index
    %c0_7 = arith.constant 0 : index
    %11 = vector.load %arg4[%c0_6, %c0_7] : memref<32x128xf32, #tpu.memory_space<vmem>>, vector<32x128xf32>
    %cst_8 = arith.constant dense<0.000000e+00> : vector<8x128xf32>
    %12 = tpu.matmul %10, %11, %cst_8 {dimension_numbers = #tpu.dot_dimension_numbers<[1], [0], [0], [1], [0, 0, 1, 1], [], []>} : vector<8x32xf32>, vector<32x128xf32>, vector<8x128xf32> -> vector<8x128xf32>
    %c0_9 = arith.constant 0 : index
    %c0_10 = arith.constant 0 : index
    %13 = vector.load %arg5[%c0_9, %c0_10] : memref<8x128xf32, #tpu.memory_space<vmem>>, vector<8x128xf32>
    tpu.vector_store %arg5[%c0_9, %c0_10], %12 {strides = array<i32>} : memref<8x128xf32, #tpu.memory_space<vmem>>, vector<8x128xf32>,
    return
  }
  func.func @transform_0(%arg0: i32) -> (i32, i32) {
    %c0_i32 = arith.constant 0 : i32
    %c0_i32_0 = arith.constant 0 : i32
    return %arg0, %c0_i32 : i32, i32
  }
  func.func @transform_1(%arg0: i32) -> (i32, i32) {
    %c0_i32 = arith.constant 0 : i32
    %c0_i32_0 = arith.constant 0 : i32
    %c0_i32_1 = arith.constant 0 : i32
    return %c0_i32, %c0_i32_0 : i32, i32
  }
  func.func @transform_2(%arg0: i32) -> (i32, i32) {
    %c0_i32 = arith.constant 0 : i32
    %c0_i32_0 = arith.constant 0 : i32
    %c0_i32_1 = arith.constant 0 : i32
    return %c0_i32, %c0_i32_0 : i32, i32
  }
  func.func @transform_3(%arg0: i32) -> (i32, i32) {
    %c0_i32 = arith.constant 0 : i32
    %c0_i32_0 = arith.constant 0 : i32
    %c0_i32_1 = arith.constant 0 : i32
    return %c0_i32, %c0_i32_0 : i32, i32
  }
  func.func @transform_4(%arg0: i32) -> (i32, i32) {
    %c0_i32 = arith.constant 0 : i32
    %c0_i32_0 = arith.constant 0 : i32
    return %arg0, %c0_i32 : i32, i32
  }
}

</mosaic_0001>

<llo_original>
// kernel: tpu_custom_call.1
$region0: #{tpu_custom_call.1}
  #allocation0 [shape = 'u32[]', space=smem, size = 0x4, offset = 0x4, fixed_abs, tag = 'smem constant byte address 0x4 - core index']
  #allocation1 [shape = 'u32[144,128]{1,0:T(1,128)}', space=vmem, size = 0x12000, scoped, tag = 'internal scratch']
  %s0 = inlined_call_operand.hbm [shape: f32[8,32], index: 0, kind: input, shape index: {}]
  %s1 = inlined_call_operand.hbm [shape: f32[32,32], index: 1, kind: input, shape index: {}]
  %s2 = inlined_call_operand.vmem [shape: f32[1,32], index: 2, kind: input, shape index: {}]
  %s3 = inlined_call_operand.hbm [shape: f32[32,128], index: 3, kind: input, shape index: {}]
  %s4 = inlined_call_operand.hbm [shape: f32[8,128], index: 4, kind: output, shape index: {}]
  %s5 = sld [smem:[#allocation0]]
  $region38: #{tpu_custom_call.1} parent=0
    _
  %s7 = ssub.s32 1, %s5
  %s8 = scalar_select 0, %s7, %s5
  $region1: #{tpu_custom_call.1} parent=0
    #allocation2 [shape = 'u8[4096]{0}', space=vmem, size = 0x1000, scoped, tag = 'input window, operand 0, single buffered']
    #allocation3 [shape = 's32[1]{0}', space=sflag, size = 0x4, scoped, tag = 'scoped memory for tpu_custom_call.1']
    #allocation4 [shape = 's32[1]{0}', space=sflag, size = 0x4, scoped, tag = 'scoped memory for tpu_custom_call.1']
    #allocation5 [shape = 'u8[16384]{0}', space=vmem, size = 0x4000, scoped, tag = 'input window, operand 1, single buffered']
    #allocation6 [shape = 's32[1]{0}', space=sflag, size = 0x4, scoped, tag = 'scoped memory for tpu_custom_call.1']
    #allocation7 [shape = 'u8[16384]{0}', space=vmem, size = 0x4000, scoped, tag = 'input window, operand 3, single buffered']
    #allocation8 [shape = 'u8[4096]{0}', space=vmem, size = 0x1000, scoped, tag = 'output window, operand 0, single buffered']
    %9 = vsyncpa [#allocation3], 0
    %10 = vsyncpa [#allocation6], 0
    %11 = vsyncpa [#allocation4], 0
    // Predicated region
    $region2: #{tpu_custom_call.1} parent=1 // pred_check
      _
    $region3: #{tpu_custom_call.1} parent=1 // pred_check_branch
      %13 = sbr.rel (0) target = $region5
    $region4: #{tpu_custom_call.1} parent=1 // pred_region
      %s15 = ssub.s32 128, 128
      %16 = vsyncadd [#allocation3], %s15
      %s18 = sshll.u32 [#allocation2], 4
      %s19 = int_to_ptr.vmem [resolvable:$true] %s18
      %21 = dma.hbm_to_vmem [thread:$0]  %s0, 128, %s19, [#allocation3]
    $region5: #{tpu_custom_call.1} parent=1 // pred_fallthru
      _
    // Predicated region
    $region6: #{tpu_custom_call.1} parent=1 // pred_check
      _
    $region7: #{tpu_custom_call.1} parent=1 // pred_check_branch
      %23 = sbr.rel (0) target = $region9
    $region8: #{tpu_custom_call.1} parent=1 // pred_region
      %s25 = ssub.s32 512, 512
      %26 = vsyncadd [#allocation6], %s25
      %s27 = sshll.u32 [#allocation5], 4
      %s28 = int_to_ptr.vmem [resolvable:$true] %s27
      %33 = dma.hbm_to_vmem [thread:$0]  %s1, 512, %s28, [#allocation6], 128, 128, 8
    $region9: #{tpu_custom_call.1} parent=1 // pred_fallthru
      _
    // Predicated region
    $region10: #{tpu_custom_call.1} parent=1 // pred_check
      _
    $region11: #{tpu_custom_call.1} parent=1 // pred_check_branch
      %35 = sbr.rel (0) target = $region13
    $region12: #{tpu_custom_call.1} parent=1 // pred_region
      _
    $region13: #{tpu_custom_call.1} parent=1 // pred_fallthru
      _
    // Predicated region
    $region14: #{tpu_custom_call.1} parent=1 // pred_check
      _
    $region15: #{tpu_custom_call.1} parent=1 // pred_check_branch
      %37 = sbr.rel (0) target = $region17
    $region16: #{tpu_custom_call.1} parent=1 // pred_region
      %s39 = ssub.s32 512, 512
      %40 = vsyncadd [#allocation6], %s39
      %s41 = sshll.u32 [#allocation7], 4
      %s42 = int_to_ptr.vmem [resolvable:$true] %s41
      %47 = dma.hbm_to_vmem [thread:$0]  %s3, 512, %s42, [#allocation6], 128, 128, 8
    $region17: #{tpu_custom_call.1} parent=1 // pred_fallthru
      _
    // Predicated region
    $region18: #{tpu_custom_call.1} parent=1 // pred_check
      _
    $region19: #{tpu_custom_call.1} parent=1 // pred_check_branch
      %49 = sbr.rel (0) target = $region21
    $region20: #{tpu_custom_call.1} parent=1 // pred_region
      %50 = dma.done [#allocation3], 128
    $region21: #{tpu_custom_call.1} parent=1 // pred_fallthru
      _
    // Predicated region
    $region22: #{tpu_custom_call.1} parent=1 // pred_check
      _
    $region23: #{tpu_custom_call.1} parent=1 // pred_check_branch
      %52 = sbr.rel (0) target = $region25
    $region24: #{tpu_custom_call.1} parent=1 // pred_region
      %53 = dma.done [#allocation6], 512
    $region25: #{tpu_custom_call.1} parent=1 // pred_fallthru
      _
    // Predicated region
    $region26: #{tpu_custom_call.1} parent=1 // pred_check
      _
    $region27: #{tpu_custom_call.1} parent=1 // pred_check_branch
      %55 = sbr.rel (0) target = $region29
    $region28: #{tpu_custom_call.1} parent=1 // pred_region
      %56 = dma.done [#allocation6], 512
    $region29: #{tpu_custom_call.1} parent=1 // pred_fallthru
      _
    %v57 = vld [vmem:[#allocation2] sm:$0xff]
    %v58 = vld [vmem:[#allocation5] sm:$0xff]
    %v59 = vld [vmem:[#allocation5 + $0x8] sm:$0xff]
    %v60 = vld [vmem:[#allocation5 + $0x10] sm:$0xff]
    %v61 = vld [vmem:[#allocation5 + $0x18] sm:$0xff]
    %v62 = vld [vmem:[%s2] sm:$0x1]
    %v64 = vlaneseq
    %v65 = vshrl.u32 %v64, 7
    %v66 = vsub.s32 0, %v65
    %v67 = vrot.slane %v62, %v66
    %vm69 = vcmask 261120
    %v71 = vsel %vm69, %v57, 0
    %73 = vmatprep.subr.mxu0 0.0
    %74 = vmatpush1.msra.mxu0 0.0
    %75 = vmatprep.subr.mxu0 0.0
    %76 = vmatpush1.msra.mxu0 0.0
    %77 = vmatprep.subr.mxu0 0.0
    %78 = vmatpush1.msra.mxu0 0.0
    %79 = vmatprep.subr.mxu0 0.0
    %80 = vmatpush1.msra.mxu0 0.0
    %81 = vmatprep.subr.mxu0 0.0
    %82 = vmatpush1.msra.mxu0 0.0
    %83 = vmatprep.subr.mxu0 0.0
    %84 = vmatpush1.msra.mxu0 0.0
    %85 = vmatprep.subr.mxu0 0.0
    %86 = vmatpush1.msra.mxu0 0.0
    %87 = vmatprep.subr.mxu0 0.0
    %88 = vmatpush1.msra.mxu0 0.0
    %89 = vmatprep.subr.mxu0 0.0
    %90 = vmatpush1.msra.mxu0 0.0
    %91 = vmatprep.subr.mxu0 0.0
    %92 = vmatpush1.msra.mxu0 0.0
    %93 = vmatprep.subr.mxu0 0.0
    %94 = vmatpush1.msra.mxu0 0.0
    %95 = vmatprep.subr.mxu0 0.0
    %96 = vmatpush1.msra.mxu0 0.0
    %97 = vmatprep.subr.mxu0 0.0
    %98 = vmatpush1.msra.mxu0 %v61
    %99 = vmatprep.subr.mxu0 0.0
    %100 = vmatpush1.msra.mxu0 %v60
    %101 = vmatprep.subr.mxu0 0.0
    %102 = vmatpush1.msra.mxu0 %v59
    %103 = vmatprep.subr.mxu0 0.0
    %104 = vmatpush1.msra.mxu0 %v58
    %105 = vmatprep.subr.mxu0 0.0
    %106 = vmatpush2.msra.mxu0 0.0
    %107 = vmatprep.subr.mxu0 0.0
    %108 = vmatpush2.msra.mxu0 0.0
    %109 = vmatprep.subr.mxu0 0.0
    %110 = vmatpush2.msra.mxu0 0.0
    %111 = vmatprep.subr.mxu0 0.0
    %112 = vmatpush2.msra.mxu0 0.0
    %113 = vmatprep.subr.mxu0 0.0
    %114 = vmatpush2.msra.mxu0 0.0
    %115 = vmatprep.subr.mxu0 0.0
    %116 = vmatpush2.msra.mxu0 0.0
    %117 = vmatprep.subr.mxu0 0.0
    %118 = vmatpush2.msra.mxu0 0.0
    %119 = vmatprep.subr.mxu0 0.0
    %120 = vmatpush2.msra.mxu0 0.0
    %121 = vmatprep.subr.mxu0 0.0
    %122 = vmatpush2.msra.mxu0 0.0
    %123 = vmatprep.subr.mxu0 0.0
    %124 = vmatpush2.msra.mxu0 0.0
    %125 = vmatprep.subr.mxu0 0.0
    %126 = vmatpush2.msra.mxu0 0.0
    %127 = vmatprep.subr.mxu0 0.0
    %128 = vmatpush2.msra.mxu0 0.0
    %129 = vmatprep.subr.mxu0 0.0
    %130 = vmatpush2.msra.mxu0 0.0
    %131 = vmatprep.subr.mxu0 0.0
    %132 = vmatpush2.msra.mxu0 0.0
    %133 = vmatprep.subr.mxu0 0.0
    %134 = vmatpush2.msra.mxu0 0.0
    %135 = vmatprep.subr.mxu0 0.0
    %136 = vmatpush2.msra.mxu0 0.0
    %137 = vmatprep.mubr.f32.mxu0 0.0
    %138 = vmatmul.mubr.f32.gmra.mxu0 %v71
    %v139 = vpop.f32.mrf.mxu0
    %v140 = vadd.f32 %v67, %v139
    %v141 = vpop.f32.mrf.mxu0
    %142 = vdwg.mxu0
    %v143 = vxor.u32 %v140, 2147483648
    %v144 = vmul.f32 %v143, 1.442695
    %v145 = vpow.pop %v144
    %v146 = vadd.f32 %v145, 1.0
    %v147 = vrcp.pop %v146
    %v148 = vmul.f32 1.0, %v147
    %v149 = vld [vmem:[#allocation7] sm:$0xff]
    %v150 = vld [vmem:[#allocation7 + $0x8] sm:$0xff]
    %v151 = vld [vmem:[#allocation7 + $0x10] sm:$0xff]
    %v152 = vld [vmem:[#allocation7 + $0x18] sm:$0xff]
    %v154 = vsel %vm69, %v148, 0
    %156 = vmatprep.subr.mxu0 0.0
    %157 = vmatpush1.msra.mxu0 0.0
    %158 = vmatprep.subr.mxu0 0.0
    %159 = vmatpush1.msra.mxu0 0.0
    %160 = vmatprep.subr.mxu0 0.0
    %161 = vmatpush1.msra.mxu0 0.0
    %162 = vmatprep.subr.mxu0 0.0
    %163 = vmatpush1.msra.mxu0 0.0
    %164 = vmatprep.subr.mxu0 0.0
    %165 = vmatpush1.msra.mxu0 0.0
    %166 = vmatprep.subr.mxu0 0.0
    %167 = vmatpush1.msra.mxu0 0.0
    %168 = vmatprep.subr.mxu0 0.0
    %169 = vmatpush1.msra.mxu0 0.0
    %170 = vmatprep.subr.mxu0 0.0
    %171 = vmatpush1.msra.mxu0 0.0
    %172 = vmatprep.subr.mxu0 0.0
    %173 = vmatpush1.msra.mxu0 0.0
    %174 = vmatprep.subr.mxu0 0.0
    %175 = vmatpush1.msra.mxu0 0.0
    %176 = vmatprep.subr.mxu0 0.0
    %177 = vmatpush1.msra.mxu0 0.0
    %178 = vmatprep.subr.mxu0 0.0
    %179 = vmatpush1.msra.mxu0 0.0
    %180 = vmatprep.subr.mxu0 0.0
    %181 = vmatpush1.msra.mxu0 %v152
    %182 = vmatprep.subr.mxu0 0.0
    %183 = vmatpush1.msra.mxu0 %v151
    %184 = vmatprep.subr.mxu0 0.0
    %185 = vmatpush1.msra.mxu0 %v150
    %186 = vmatprep.subr.mxu0 0.0
    %187 = vmatpush1.msra.mxu0 %v149
    %188 = vmatprep.subr.mxu0 0.0
    %189 = vmatpush2.msra.mxu0 0.0
    %190 = vmatprep.subr.mxu0 0.0
    %191 = vmatpush2.msra.mxu0 0.0
    %192 = vmatprep.subr.mxu0 0.0
    %193 = vmatpush2.msra.mxu0 0.0
    %194 = vmatprep.subr.mxu0 0.0
    %195 = vmatpush2.msra.mxu0 0.0
    %196 = vmatprep.subr.mxu0 0.0
    %197 = vmatpush2.msra.mxu0 0.0
    %198 = vmatprep.subr.mxu0 0.0
    %199 = vmatpush2.msra.mxu0 0.0
    %200 = vmatprep.subr.mxu0 0.0
    %201 = vmatpush2.msra.mxu0 0.0
    %202 = vmatprep.subr.mxu0 0.0
    %203 = vmatpush2.msra.mxu0 0.0
    %204 = vmatprep.subr.mxu0 0.0
    %205 = vmatpush2.msra.mxu0 0.0
    %206 = vmatprep.subr.mxu0 0.0
    %207 = vmatpush2.msra.mxu0 0.0
    %208 = vmatprep.subr.mxu0 0.0
    %209 = vmatpush2.msra.mxu0 0.0
    %210 = vmatprep.subr.mxu0 0.0
    %211 = vmatpush2.msra.mxu0 0.0
    %212 = vmatprep.subr.mxu0 0.0
    %213 = vmatpush2.msra.mxu0 0.0
    %214 = vmatprep.subr.mxu0 0.0
    %215 = vmatpush2.msra.mxu0 0.0
    %216 = vmatprep.subr.mxu0 0.0
    %217 = vmatpush2.msra.mxu0 0.0
    %218 = vmatprep.subr.mxu0 0.0
    %219 = vmatpush2.msra.mxu0 0.0
    %220 = vmatprep.mubr.f32.mxu0 0.0
    %221 = vmatmul.mubr.f32.gmra.mxu0 %v154
    %v222 = vpop.f32.mrf.mxu0
    %v223 = vadd.f32 0.0, %v222
    %v224 = vpop.f32.mrf.mxu0
    %225 = vdwg.mxu0
    %226 = vst [vmem:[#allocation8] sm:$0xff] %v223
    // Predicated region
    $region30: #{tpu_custom_call.1} parent=1 // pred_check
      _
    $region31: #{tpu_custom_call.1} parent=1 // pred_check_branch
      %228 = sbr.rel (0) target = $region33
    $region32: #{tpu_custom_call.1} parent=1 // pred_region
      %s230 = ssub.s32 128, 128
      %231 = vsyncadd [#allocation4], %s230
      %s233 = sshll.u32 [#allocation8], 4
      %s234 = int_to_ptr.vmem [resolvable:$true] %s233
      %236 = dma.vmem_to_hbm [thread:$0]  %s234, 128, %s4, [#allocation4]
    $region33: #{tpu_custom_call.1} parent=1 // pred_fallthru
      _
    // Predicated region
    $region34: #{tpu_custom_call.1} parent=1 // pred_check
      _
    $region35: #{tpu_custom_call.1} parent=1 // pred_check_branch
      %238 = sbr.rel (0) target = $region37
    $region36: #{tpu_custom_call.1} parent=1 // pred_region
      %239 = dma.done [#allocation4], 128
    $region37: #{tpu_custom_call.1} parent=1 // pred_fallthru
      _
    %240 = vsyncpa [#allocation3], 1
    %241 = vsyncpa [#allocation6], 1
    %242 = vsyncpa [#allocation4], 1

// kernel: tpu_custom_call.1
$region0: #{tpu_custom_call.1}
  #allocation0 [shape = 'u32[]', space=smem, size = 0x4, offset = 0x4, fixed_abs, tag = 'smem constant byte address 0x4 - core index']
  #allocation1 [shape = 'u32[144,128]{1,0:T(1,128)}', space=vmem, size = 0x12000, scoped, tag = 'internal scratch']
  %s0 = inlined_call_operand.hbm [shape: f32[8,32], index: 0, kind: input, shape index: {}]
  %s1 = inlined_call_operand.hbm [shape: f32[32,32], index: 1, kind: input, shape index: {}]
  %s2 = inlined_call_operand.vmem [shape: f32[1,32], index: 2, kind: input, shape index: {}]
  %s3 = inlined_call_operand.hbm [shape: f32[32,128], index: 3, kind: input, shape index: {}]
  %s4 = inlined_call_operand.hbm [shape: f32[8,128], index: 4, kind: output, shape index: {}]
  %s5 = sld [smem:[#allocation0]]
  $region38: #{tpu_custom_call.1} parent=0
    _
  %s7 = ssub.s32 1, %s5
  %s8 = scalar_select 0, %s7, %s5
  $region1: #{tpu_custom_call.1} parent=0
    #allocation2 [shape = 'u8[4096]{0}', space=vmem, size = 0x1000, scoped, tag = 'input window, operand 0, single buffered']
    #allocation3 [shape = 's32[1]{0}', space=sflag, size = 0x4, scoped, tag = 'scoped memory for tpu_custom_call.1']
    #allocation4 [shape = 's32[1]{0}', space=sflag, size = 0x4, scoped, tag = 'scoped memory for tpu_custom_call.1']
    #allocation5 [shape = 'u8[16384]{0}', space=vmem, size = 0x4000, scoped, tag = 'input window, operand 1, single buffered']
    #allocation6 [shape = 's32[1]{0}', space=sflag, size = 0x4, scoped, tag = 'scoped memory for tpu_custom_call.1']
    #allocation7 [shape = 'u8[16384]{0}', space=vmem, size = 0x4000, scoped, tag = 'input window, operand 3, single buffered']
    #allocation8 [shape = 'u8[4096]{0}', space=vmem, size = 0x1000, scoped, tag = 'output window, operand 0, single buffered']
    %9 = vsyncpa [#allocation3], 0
    %10 = vsyncpa [#allocation6], 0
    %11 = vsyncpa [#allocation4], 0
    // Predicated region
    $region2: #{tpu_custom_call.1} parent=1 // pred_check
      _
    $region3: #{tpu_custom_call.1} parent=1 // pred_check_branch
      %13 = sbr.rel (0) target = $region5
    $region4: #{tpu_custom_call.1} parent=1 // pred_region
      %s15 = ssub.s32 128, 128
      %16 = vsyncadd [#allocation3], %s15
      %s18 = sshll.u32 [#allocation2], 4
      %s19 = int_to_ptr.vmem [resolvable:$true] %s18
      %21 = dma.hbm_to_vmem [thread:$0]  %s0, 128, %s19, [#allocation3]
    $region5: #{tpu_custom_call.1} parent=1 // pred_fallthru
      _
    // Predicated region
    $region6: #{tpu_custom_call.1} parent=1 // pred_check
      _
    $region7: #{tpu_custom_call.1} parent=1 // pred_check_branch
      %23 = sbr.rel (0) target = $region9
    $region8: #{tpu_custom_call.1} parent=1 // pred_region
      %s25 = ssub.s32 512, 512
      %26 = vsyncadd [#allocation6], %s25
      %s27 = sshll.u32 [#allocation5], 4
      %s28 = int_to_ptr.vmem [resolvable:$true] %s27
      %33 = dma.hbm_to_vmem [thread:$0]  %s1, 512, %s28, [#allocation6], 128, 128, 8
    $region9: #{tpu_custom_call.1} parent=1 // pred_fallthru
      _
    // Predicated region
    $region10: #{tpu_custom_call.1} parent=1 // pred_check
      _
    $region11: #{tpu_custom_call.1} parent=1 // pred_check_branch
      %35 = sbr.rel (0) target = $region13
    $region12: #{tpu_custom_call.1} parent=1 // pred_region
      _
    $region13: #{tpu_custom_call.1} parent=1 // pred_fallthru
      _
    // Predicated region
    $region14: #{tpu_custom_call.1} parent=1 // pred_check
      _
    $region15: #{tpu_custom_call.1} parent=1 // pred_check_branch
      %37 = sbr.rel (0) target = $region17
    $region16: #{tpu_custom_call.1} parent=1 // pred_region
      %s39 = ssub.s32 512, 512
      %40 = vsyncadd [#allocation6], %s39
      %s41 = sshll.u32 [#allocation7], 4
      %s42 = int_to_ptr.vmem [resolvable:$true] %s41
      %47 = dma.hbm_to_vmem [thread:$0]  %s3, 512, %s42, [#allocation6], 128, 128, 8
    $region17: #{tpu_custom_call.1} parent=1 // pred_fallthru
      _
    // Predicated region
    $region18: #{tpu_custom_call.1} parent=1 // pred_check
      _
    $region19: #{tpu_custom_call.1} parent=1 // pred_check_branch
      %49 = sbr.rel (0) target = $region21
    $region20: #{tpu_custom_call.1} parent=1 // pred_region
      %50 = dma.done [#allocation3], 128
    $region21: #{tpu_custom_call.1} parent=1 // pred_fallthru
      _
    // Predicated region
    $region22: #{tpu_custom_call.1} parent=1 // pred_check
      _
    $region23: #{tpu_custom_call.1} parent=1 // pred_check_branch
      %52 = sbr.rel (0) target = $region25
    $region24: #{tpu_custom_call.1} parent=1 // pred_region
      %53 = dma.done [#allocation6], 512
    $region25: #{tpu_custom_call.1} parent=1 // pred_fallthru
      _
    // Predicated region
    $region26: #{tpu_custom_call.1} parent=1 // pred_check
      _
    $region27: #{tpu_custom_call.1} parent=1 // pred_check_branch
      %55 = sbr.rel (0) target = $region29
    $region28: #{tpu_custom_call.1} parent=1 // pred_region
      %56 = dma.done [#allocation6], 512
    $region29: #{tpu_custom_call.1} parent=1 // pred_fallthru
      _
    %v57 = vld [vmem:[#allocation2] sm:$0xff]
    %v58 = vld [vmem:[#allocation5] sm:$0xff]
    %v59 = vld [vmem:[#allocation5 + $0x8] sm:$0xff]
    %v60 = vld [vmem:[#allocation5 + $0x10] sm:$0xff]
    %v61 = vld [vmem:[#allocation5 + $0x18] sm:$0xff]
    %v62 = vld [vmem:[%s2] sm:$0x1]
    %v64 = vlaneseq
    %v65 = vshrl.u32 %v64, 7
    %v66 = vsub.s32 0, %v65
    %v67 = vrot.slane %v62, %v66
    %vm69 = vcmask 261120
    %v71 = vsel %vm69, %v57, 0
    %73 = vmatprep.subr.mxu0 0.0
    %74 = vmatpush1.msra.mxu0 0.0
    %75 = vmatprep.subr.mxu0 0.0
    %76 = vmatpush1.msra.mxu0 0.0
    %77 = vmatprep.subr.mxu0 0.0
    %78 = vmatpush1.msra.mxu0 0.0
    %79 = vmatprep.subr.mxu0 0.0
    %80 = vmatpush1.msra.mxu0 0.0
    %81 = vmatprep.subr.mxu0 0.0
    %82 = vmatpush1.msra.mxu0 0.0
    %83 = vmatprep.subr.mxu0 0.0
    %84 = vmatpush1.msra.mxu0 0.0
    %85 = vmatprep.subr.mxu0 0.0
    %86 = vmatpush1.msra.mxu0 0.0
    %87 = vmatprep.subr.mxu0 0.0
    %88 = vmatpush1.msra.mxu0 0.0
    %89 = vmatprep.subr.mxu0 0.0
    %90 = vmatpush1.msra.mxu0 0.0
    %91 = vmatprep.subr.mxu0 0.0
    %92 = vmatpush1.msra.mxu0 0.0
    %93 = vmatprep.subr.mxu0 0.0
    %94 = vmatpush1.msra.mxu0 0.0
    %95 = vmatprep.subr.mxu0 0.0
    %96 = vmatpush1.msra.mxu0 0.0
    %97 = vmatprep.subr.mxu0 0.0
    %98 = vmatpush1.msra.mxu0 %v61
    %99 = vmatprep.subr.mxu0 0.0
    %100 = vmatpush1.msra.mxu0 %v60
    %101 = vmatprep.subr.mxu0 0.0
    %102 = vmatpush1.msra.mxu0 %v59
    %103 = vmatprep.subr.mxu0 0.0
    %104 = vmatpush1.msra.mxu0 %v58
    %105 = vmatprep.subr.mxu0 0.0
    %106 = vmatpush2.msra.mxu0 0.0
    %107 = vmatprep.subr.mxu0 0.0
    %108 = vmatpush2.msra.mxu0 0.0
    %109 = vmatprep.subr.mxu0 0.0
    %110 = vmatpush2.msra.mxu0 0.0
    %111 = vmatprep.subr.mxu0 0.0
    %112 = vmatpush2.msra.mxu0 0.0
    %113 = vmatprep.subr.mxu0 0.0
    %114 = vmatpush2.msra.mxu0 0.0
    %115 = vmatprep.subr.mxu0 0.0
    %116 = vmatpush2.msra.mxu0 0.0
    %117 = vmatprep.subr.mxu0 0.0
    %118 = vmatpush2.msra.mxu0 0.0
    %119 = vmatprep.subr.mxu0 0.0
    %120 = vmatpush2.msra.mxu0 0.0
    %121 = vmatprep.subr.mxu0 0.0
    %122 = vmatpush2.msra.mxu0 0.0
    %123 = vmatprep.subr.mxu0 0.0
    %124 = vmatpush2.msra.mxu0 0.0
    %125 = vmatprep.subr.mxu0 0.0
    %126 = vmatpush2.msra.mxu0 0.0
    %127 = vmatprep.subr.mxu0 0.0
    %128 = vmatpush2.msra.mxu0 0.0
    %129 = vmatprep.subr.mxu0 0.0
    %130 = vmatpush2.msra.mxu0 0.0
    %131 = vmatprep.subr.mxu0 0.0
    %132 = vmatpush2.msra.mxu0 0.0
    %133 = vmatprep.subr.mxu0 0.0
    %134 = vmatpush2.msra.mxu0 0.0
    %135 = vmatprep.subr.mxu0 0.0
    %136 = vmatpush2.msra.mxu0 0.0
    %137 = vmatprep.mubr.f32.mxu0 0.0
    %138 = vmatmul.mubr.f32.gmra.mxu0 %v71
    %v139 = vpop.f32.mrf.mxu0
    %v140 = vadd.f32 %v67, %v139
    %v141 = vpop.f32.mrf.mxu0
    %142 = vdwg.mxu0
    %v143 = vxor.u32 %v140, 2147483648
    %v144 = vmul.f32 %v143, 1.442695
    %v145 = vpow.pop %v144
    %v146 = vadd.f32 %v145, 1.0
    %v147 = vrcp.pop %v146
    %v148 = vmul.f32 1.0, %v147
    %v149 = vld [vmem:[#allocation7] sm:$0xff]
    %v150 = vld [vmem:[#allocation7 + $0x8] sm:$0xff]
    %v151 = vld [vmem:[#allocation7 + $0x10] sm:$0xff]
    %v152 = vld [vmem:[#allocation7 + $0x18] sm:$0xff]
    %v154 = vsel %vm69, %v148, 0
    %156 = vmatprep.subr.mxu0 0.0
    %157 = vmatpush1.msra.mxu0 0.0
    %158 = vmatprep.subr.mxu0 0.0
    %159 = vmatpush1.msra.mxu0 0.0
    %160 = vmatprep.subr.mxu0 0.0
    %161 = vmatpush1.msra.mxu0 0.0
    %162 = vmatprep.subr.mxu0 0.0
    %163 = vmatpush1.msra.mxu0 0.0
    %164 = vmatprep.subr.mxu0 0.0
    %165 = vmatpush1.msra.mxu0 0.0
    %166 = vmatprep.subr.mxu0 0.0
    %167 = vmatpush1.msra.mxu0 0.0
    %168 = vmatprep.subr.mxu0 0.0
    %169 = vmatpush1.msra.mxu0 0.0
    %170 = vmatprep.subr.mxu0 0.0
    %171 = vmatpush1.msra.mxu0 0.0
    %172 = vmatprep.subr.mxu0 0.0
    %173 = vmatpush1.msra.mxu0 0.0
    %174 = vmatprep.subr.mxu0 0.0
    %175 = vmatpush1.msra.mxu0 0.0
    %176 = vmatprep.subr.mxu0 0.0
    %177 = vmatpush1.msra.mxu0 0.0
    %178 = vmatprep.subr.mxu0 0.0
    %179 = vmatpush1.msra.mxu0 0.0
    %180 = vmatprep.subr.mxu0 0.0
    %181 = vmatpush1.msra.mxu0 %v152
    %182 = vmatprep.subr.mxu0 0.0
    %183 = vmatpush1.msra.mxu0 %v151
    %184 = vmatprep.subr.mxu0 0.0
    %185 = vmatpush1.msra.mxu0 %v150
    %186 = vmatprep.subr.mxu0 0.0
    %187 = vmatpush1.msra.mxu0 %v149
    %188 = vmatprep.subr.mxu0 0.0
    %189 = vmatpush2.msra.mxu0 0.0
    %190 = vmatprep.subr.mxu0 0.0
    %191 = vmatpush2.msra.mxu0 0.0
    %192 = vmatprep.subr.mxu0 0.0
    %193 = vmatpush2.msra.mxu0 0.0
    %194 = vmatprep.subr.mxu0 0.0
    %195 = vmatpush2.msra.mxu0 0.0
    %196 = vmatprep.subr.mxu0 0.0
    %197 = vmatpush2.msra.mxu0 0.0
    %198 = vmatprep.subr.mxu0 0.0
    %199 = vmatpush2.msra.mxu0 0.0
    %200 = vmatprep.subr.mxu0 0.0
    %201 = vmatpush2.msra.mxu0 0.0
    %202 = vmatprep.subr.mxu0 0.0
    %203 = vmatpush2.msra.mxu0 0.0
    %204 = vmatprep.subr.mxu0 0.0
    %205 = vmatpush2.msra.mxu0 0.0
    %206 = vmatprep.subr.mxu0 0.0
    %207 = vmatpush2.msra.mxu0 0.0
    %208 = vmatprep.subr.mxu0 0.0
    %209 = vmatpush2.msra.mxu0 0.0
    %210 = vmatprep.subr.mxu0 0.0
    %211 = vmatpush2.msra.mxu0 0.0
    %212 = vmatprep.subr.mxu0 0.0
    %213 = vmatpush2.msra.mxu0 0.0
    %214 = vmatprep.subr.mxu0 0.0
    %215 = vmatpush2.msra.mxu0 0.0
    %216 = vmatprep.subr.mxu0 0.0
    %217 = vmatpush2.msra.mxu0 0.0
    %218 = vmatprep.subr.mxu0 0.0
    %219 = vmatpush2.msra.mxu0 0.0
    %220 = vmatprep.mubr.f32.mxu0 0.0
    %221 = vmatmul.mubr.f32.gmra.mxu0 %v154
    %v222 = vpop.f32.mrf.mxu0
    %v223 = vadd.f32 0.0, %v222
    %v224 = vpop.f32.mrf.mxu0
    %225 = vdwg.mxu0
    %226 = vst [vmem:[#allocation8] sm:$0xff] %v223
    // Predicated region
    $region30: #{tpu_custom_call.1} parent=1 // pred_check
      _
    $region31: #{tpu_custom_call.1} parent=1 // pred_check_branch
      %228 = sbr.rel (0) target = $region33
    $region32: #{tpu_custom_call.1} parent=1 // pred_region
      %s230 = ssub.s32 128, 128
      %231 = vsyncadd [#allocation4], %s230
      %s233 = sshll.u32 [#allocation8], 4
      %s234 = int_to_ptr.vmem [resolvable:$true] %s233
      %236 = dma.vmem_to_hbm [thread:$0]  %s234, 128, %s4, [#allocation4]
    $region33: #{tpu_custom_call.1} parent=1 // pred_fallthru
      _
    // Predicated region
    $region34: #{tpu_custom_call.1} parent=1 // pred_check
      _
    $region35: #{tpu_custom_call.1} parent=1 // pred_check_branch
      %238 = sbr.rel (0) target = $region37
    $region36: #{tpu_custom_call.1} parent=1 // pred_region
      %239 = dma.done [#allocation4], 128
    $region37: #{tpu_custom_call.1} parent=1 // pred_fallthru
      _
    %240 = vsyncpa [#allocation3], 1
    %241 = vsyncpa [#allocation6], 1
    %242 = vsyncpa [#allocation4], 1

</llo_original>
